<compile_context>
chip_gen: v7x
topology: tpu7x:2x2x1
jax: 0.10.0
libtpu: 0.0.40
codegen_flags: <defaults>
</compile_context>

<pallas_src>
import functools

import jax
import jax.numpy as jnp
from jax import lax
from jax.experimental import pallas as pl
from jax.experimental.pallas import tpu as pltpu

_EPS = 1e-12
_VMEM_LIMIT = 48 * 1024 * 1024   # explicit scoped-VMEM ceiling (<= v7x 64 MiB)
_LOSS_CORE_SPLITS = 2            # leading "parallel" axis -> both TCs on v7x


# ------------------------------ helpers -------------------------------------

def _round_up(x, m):
    return ((x + m - 1) // m) * m


def _pad_2d(x, rows, cols):
    r, c = x.shape
    return jnp.pad(x, ((0, rows - r), (0, cols - c)))


def _choose_tile(n_rows, d_pad, n_live_bufs, budget_bytes=16 * 1024 * 1024):
    """Largest row tile (<=2048, >=8, mult of 8) whose live VMEM footprint
    (n_live_bufs buffers of [tile, d_pad] f32) fits in budget_bytes; capped
    by the (8-rounded) problem size so tiny tables are not inflated."""
    cap = max(8, budget_bytes // (n_live_bufs * d_pad * 4))
    tile = 8
    for t in (2048, 1024, 512, 256, 128, 64, 32, 16, 8):
        if t <= cap:
            tile = t
            break
    return min(tile, _round_up(max(n_rows, 1), 8))


# ----------------------------- Pallas kernels ------------------------------

def _normalize_kernel(emb_ref, out_ref):
    x = emb_ref[...]                                         # [tile, D] f32
    ss = jnp.sum(x * x, axis=1, keepdims=True)               # [tile, 1]
    out_ref[...] = x * lax.rsqrt(ss + _EPS)                  # EUP rsqrt, no div


def normalize_rows(emb):
    """Row-wise L2 normalization, tiled over rows, written in place."""
    n, d = emb.shape
    tile = _choose_tile(n, d, n_live_bufs=6)   # in+out double-buffered + temps
    assert n % tile == 0, (n, tile)            # tables are padded to tile mult
    spec = pl.BlockSpec((tile, d), lambda i: (i, 0))
    return pl.pallas_call(
        _normalize_kernel,
        out_shape=jax.ShapeDtypeStruct(emb.shape, emb.dtype),
        grid=(n // tile,),
        in_specs=[spec],
        out_specs=spec,
        input_output_aliases={0: 0},           # in-place, like .data.div_()
        compiler_params=pltpu.CompilerParams(
            dimension_semantics=("parallel",),
            vmem_limit_bytes=_VMEM_LIMIT),
    )(emb)


def _transe_loss_kernel(ph_ref, pr_ref, pt_ref, nh_ref, nr_ref, nt_ref,
                        out_ref, acc_ref, *, gamma, valid_b, b_pad, tile_b,
                        tiles_per_core):
    c = pl.program_id(0)                  # core/batch-half ("parallel")
    i = pl.program_id(1)                  # batch tile within half ("arbitrary")
    ni = pl.num_programs(1)

    @pl.when(i == 0)
    def _():
        acc_ref[...] = jnp.zeros_like(acc_ref)

    dp = ph_ref[...] + pr_ref[...] - pt_ref[...]             # [tile_b, D]
    dn = nh_ref[...] + nr_ref[...] - nt_ref[...]             # [tile_b, D]
    pos = jnp.sqrt(jnp.sum(dp * dp, axis=1, keepdims=True))  # [tile_b, 1]
    neg = jnp.sqrt(jnp.sum(dn * dn, axis=1, keepdims=True))  # [tile_b, 1]

    # MarginRankingLoss(margin=gamma, target=-1, reduction='mean'):
    #   mean( max(0, pos - neg + gamma) )
    hinge = jnp.maximum(pos - neg + gamma, 0.0)              # [tile_b, 1]

    # Mask padded batch rows.  Static python branch: zero cost when the batch
    # is already a multiple of (num_splits * tile_b).
    if b_pad > valid_b:
        row = ((c * tiles_per_core + i) * tile_b
               + lax.broadcasted_iota(jnp.int32, hinge.shape, 0))
        hinge = jnp.where(row < valid_b, hinge, 0.0)

    # Plain VPU add each step; no per-step cross-lane reduce / narrow store.
    acc_ref[...] = acc_ref[...] + hinge

    @pl.when(i == ni - 1)
    def _():
        # One reduce + one lane-dense store per core; /valid_b happens outside.
        out_ref[...] = jnp.full(out_ref.shape, jnp.sum(acc_ref[...]),
                                dtype=out_ref.dtype)


def transe_loss_partials(ph, pr, pt, nh, nr, nt, *, gamma, valid_b, b_pad,
                         tile_b, num_splits):
    """Per-core partial hinge sums, shape [num_splits, 8, 128] (scalar value
    broadcast across the lane-dense block; read element [c, 0, 0])."""
    d_pad = ph.shape[1]
    tiles_per_core = b_pad // (num_splits * tile_b)
    kernel = functools.partial(
        _transe_loss_kernel, gamma=float(gamma), valid_b=int(valid_b),
        b_pad=int(b_pad), tile_b=int(tile_b),
        tiles_per_core=int(tiles_per_core))
    in_spec = pl.BlockSpec((tile_b, d_pad),
                           lambda c, i: (c * tiles_per_core + i, 0))
    return pl.pallas_call(
        kernel,
        out_shape=jax.ShapeDtypeStruct((num_splits, 8, 128), jnp.float32),
        grid=(num_splits, tiles_per_core),
        in_specs=[in_spec] * 6,
        out_specs=pl.BlockSpec((1, 8, 128), lambda c, i: (c, 0, 0)),
        scratch_shapes=[pltpu.VMEM((tile_b, 1), jnp.float32)],
        compiler_params=pltpu.CompilerParams(
            dimension_semantics=("parallel", "arbitrary"),
            vmem_limit_bytes=_VMEM_LIMIT),
    )(ph, pr, pt, nh, nr, nt)


# ------------------------------ jitted forward -------------------------------

def _transe_forward(entity_emb, relation_emb, pos_triplet, neg_triplet, *, gamma):
    # In-place (donated + aliased) row L2-normalization of the entity table.
    entity_emb = normalize_rows(entity_emb)

    b = pos_triplet.shape[0]
    d_pad = entity_emb.shape[1]

    # Note: batch size is baked into the compiled kernel; distinct batch sizes
    # recompile (fine for fixed-size KGE training batches).
    num_splits = _LOSS_CORE_SPLITS
    tile_b = _choose_tile(pl.cdiv(b, num_splits), d_pad, n_live_bufs=16)
    b_pad = _round_up(max(b, 1), num_splits * tile_b)
    pad = b_pad - b
    if pad:
        pos_triplet = jnp.pad(pos_triplet, ((0, pad), (0, 0)))
        neg_triplet = jnp.pad(neg_triplet, ((0, pad), (0, 0)))

    # TODO(synk): fuse these gathers into the loss kernel via scalar-prefetch
    # indices + per-row DMA from tables at memory_space=pl.ANY (~3x less HBM
    # traffic on the loss path); kept as jnp.take under the same jit for now.
    def gather(tri):
        h = jnp.take(entity_emb, tri[:, 0], axis=0)
        r = jnp.take(relation_emb, tri[:, 1], axis=0)
        t = jnp.take(entity_emb, tri[:, 2], axis=0)
        return h, r, t

    ph, pr, pt = gather(pos_triplet)
    nh, nr, nt = gather(neg_triplet)

    partials = transe_loss_partials(ph, pr, pt, nh, nr, nt,
                                    gamma=gamma, valid_b=b, b_pad=b_pad,
                                    tile_b=tile_b, num_splits=num_splits)
    loss = jnp.sum(partials[:, 0, 0]) / float(b)    # global-B mean
    return entity_emb, loss


# ----------------------------- Model wrapper --------------------------------

class TransEPallas:
    def __init__(self, num_entity, num_relation, emb_dim, gamma, seed):
        self.emb_dim = emb_dim
        self.num_entity = num_entity
        self.num_relation = num_relation
        self.gamma = float(gamma)

        d_pad = _round_up(emb_dim, 128)                  # lane-dense last dim
        ent_tile = _choose_tile(num_entity, d_pad, n_live_bufs=6)
        rel_tile = _choose_tile(num_relation, d_pad, n_live_bufs=6)
        n_ent_pad = _round_up(num_entity, ent_tile)      # tile-multiple rows
        n_rel_pad = _round_up(num_relation, rel_tile)

        key = jax.random.PRNGKey(seed)
        k_ent, k_rel = jax.random.split(key)
        r = 6.0 / float(emb_dim) ** 0.5     # uniform(-6/sqrt(d), 6/sqrt(d))

        ent = jax.random.uniform(k_ent, (num_entity, emb_dim), jnp.float32, -r, r)
        rel = jax.random.uniform(k_rel, (num_relation, emb_dim), jnp.float32, -r, r)

        # zero-padding does not change any L2 norm / distance
        self.entity_emb = _pad_2d(ent, n_ent_pad, d_pad)
        # relation embeddings are L2-normalized once at init (as in torch)
        self.relation_emb = normalize_rows(_pad_2d(rel, n_rel_pad, d_pad))

        # Donate the entity table: lets the in-place pallas normalize alias
        # the caller's buffer instead of copying the whole table each forward.
        self._forward = jax.jit(
            functools.partial(_transe_forward, gamma=self.gamma),
            donate_argnums=(0,))

    def forward(self, pos_triplet, neg_triplet):
        self.entity_emb, loss = self._forward(
            self.entity_emb, self.relation_emb, pos_triplet, neg_triplet)
        return loss

    def get_embeddings(self):
        return (self.entity_emb[:self.num_entity, :self.emb_dim],
                self.relation_emb[:self.num_relation, :self.emb_dim])


# --------------------------------- main --------------------------------------

if __name__ == "__main__":
    num_entity, num_relation, emb_dim = 32, 8, 32
    batch = 8
    gamma = 1.0
    seed = 0

    model = TransEPallas(num_entity, num_relation, emb_dim, gamma, seed)

    key = jax.random.PRNGKey(0)
    k1, k2, k3, k4 = jax.random.split(key, 4)
    pos_ents = jax.random.randint(k1, (batch, 2), 0, num_entity, dtype=jnp.int32)
    pos_rels = jax.random.randint(k2, (batch, 1), 0, num_relation, dtype=jnp.int32)
    neg_ents = jax.random.randint(k3, (batch, 2), 0, num_entity, dtype=jnp.int32)
    neg_rels = jax.random.randint(k4, (batch, 1), 0, num_relation, dtype=jnp.int32)

    pos_triplet = jnp.concatenate(
        [pos_ents[:, :1], pos_rels, pos_ents[:, 1:]], axis=1)   # [B, 3] (h, r, t)
    neg_triplet = jnp.concatenate(
        [neg_ents[:, :1], neg_rels, neg_ents[:, 1:]], axis=1)   # [B, 3] (h, r, t)

    # Snapshot tables to HOST before the forward: the entity table is donated
    # into the jit, so its pre-forward device buffer is invalidated afterwards.
    ent_before = jnp.asarray(jax.device_get(model.entity_emb))
    rel_norm = jnp.asarray(jax.device_get(model.relation_emb))

    loss = model.forward(pos_triplet, neg_triplet)
    jax.block_until_ready(loss)

    # pure-JAX reference for correctness
    ent_n = ent_before * lax.rsqrt(
        jnp.sum(ent_before * ent_before, axis=1, keepdims=True) + _EPS)

    def ref_dist(tri):
        d = ent_n[tri[:, 0]] + rel_norm[tri[:, 1]] - ent_n[tri[:, 2]]
        return jnp.sqrt(jnp.sum(d * d, axis=1))

    ref_loss = jnp.mean(jnp.maximum(
        ref_dist(pos_triplet) - ref_dist(neg_triplet) + gamma, 0.0))

    assert loss.shape == ()
    assert bool(jnp.isfinite(loss)) and float(loss) >= 0.0
    assert abs(float(loss) - float(ref_loss)) < 1e-4, (float(loss), float(ref_loss))

    # entity table was normalized in place by the forward pass
    norms = jnp.sqrt(jnp.sum(model.entity_emb[:num_entity] ** 2, axis=1))
    assert bool(jnp.all(jnp.abs(norms - 1.0) < 1e-3))

    print("KERNEL_OK")
</pallas_src>

<mosaic_0001>
module attributes {stable_mosaic.version = 11 : i64} {
  func.func @_normalize_kernel(%arg0: i32, %arg1: memref<8x128xf32, #tpu.memory_space<vmem>>, %arg2: memref<8x128xf32, #tpu.memory_space<vmem>>) attributes {dimension_semantics = [#tpu.dimension_semantics<parallel>], iteration_bounds = array<i64: 1>, scalar_prefetch = 0 : i64, scratch_operands = 0 : i64, tpu.core_type = #tpu.core_type<tc>, window_params = [{transform_indices = @transform_0, window_bounds = array<i64: 8, 128>}, {transform_indices = @transform_1, window_bounds = array<i64: 8, 128>}]} {
    %c0 = arith.constant 0 : index
    %c0_0 = arith.constant 0 : index
    %0 = vector.load %arg1[%c0, %c0_0] : memref<8x128xf32, #tpu.memory_space<vmem>>, vector<8x128xf32>
    %1 = arith.mulf %0, %0 : vector<8x128xf32>
    %cst = arith.constant dense<0.000000e+00> : vector<8xf32>
    %2 = vector.multi_reduction <add>, %1, %cst [1] : vector<8x128xf32> to vector<8xf32>
    %3 = vector.shape_cast %2 : vector<8xf32> to vector<8x1xf32>
    %cst_1 = arith.constant 9.99999996E-13 : f32
    %4 = vector.broadcast %cst_1 : f32 to vector<8x1xf32>
    %5 = arith.addf %3, %4 : vector<8x1xf32>
    %6 = math.rsqrt %5 : vector<8x1xf32>
    %7 = vector.broadcast %6 : vector<8x1xf32> to vector<8x128xf32>
    %8 = arith.mulf %0, %7 : vector<8x128xf32>
    %c0_2 = arith.constant 0 : index
    %c0_3 = arith.constant 0 : index
    %9 = vector.load %arg2[%c0_2, %c0_3] : memref<8x128xf32, #tpu.memory_space<vmem>>, vector<8x128xf32>
    tpu.vector_store %arg2[%c0_2, %c0_3], %8 {strides = array<i32>} : memref<8x128xf32, #tpu.memory_space<vmem>>, vector<8x128xf32>,
    return
  }
  func.func @transform_0(%arg0: i32) -> (i32, i32) {
    %c0_i32 = arith.constant 0 : i32
    %c0_i32_0 = arith.constant 0 : i32
    return %arg0, %c0_i32 : i32, i32
  }
  func.func @transform_1(%arg0: i32) -> (i32, i32) {
    %c0_i32 = arith.constant 0 : i32
    %c0_i32_0 = arith.constant 0 : i32
    return %arg0, %c0_i32 : i32, i32
  }
}

</mosaic_0001>

<llo_original>
// kernel: tpu_custom_call.1
$region0: #{tpu_custom_call.1}
  #allocation0 [shape = 'u32[]', space=smem, size = 0x4, offset = 0x4, fixed_abs, tag = 'smem constant byte address 0x4 - core index']
  #allocation1 [shape = 'u32[144,128]{1,0:T(1,128)}', space=vmem, size = 0x12000, scoped, tag = 'internal scratch']
  %s0 = inlined_call_operand.hbm [shape: f32[8,128], index: 0, kind: input, shape index: {}, may-alias: {0,1}]
  %s1 = inlined_call_operand.hbm [shape: f32[8,128], index: 1, kind: output, shape index: {}, may-alias: {0,1}]
  %s2 = sld [smem:[#allocation0]]
  $region18: #{tpu_custom_call.1} parent=0
    _
  %s4 = ssub.s32 1, %s2
  %s5 = scalar_select 0, %s4, %s2
  $region1: #{tpu_custom_call.1} parent=0
    #allocation2 [shape = 'u8[4096]{0}', space=vmem, size = 0x1000, scoped, tag = 'input window, operand 0, single buffered']
    #allocation3 [shape = 's32[1]{0}', space=sflag, size = 0x4, scoped, tag = 'scoped memory for tpu_custom_call.1']
    #allocation4 [shape = 's32[1]{0}', space=sflag, size = 0x4, scoped, tag = 'scoped memory for tpu_custom_call.1']
    #allocation5 [shape = 'u8[4096]{0}', space=vmem, size = 0x1000, scoped, tag = 'output window, operand 0, single buffered']
    %6 = vsyncpa [#allocation3], 0
    %7 = vsyncpa [#allocation4], 0
    // Predicated region
    $region2: #{tpu_custom_call.1} parent=1 // pred_check
      _
    $region3: #{tpu_custom_call.1} parent=1 // pred_check_branch
      %9 = sbr.rel (0) target = $region5
    $region4: #{tpu_custom_call.1} parent=1 // pred_region
      %s11 = ssub.s32 128, 128
      %12 = vsyncadd [#allocation3], %s11
      %s14 = sshll.u32 [#allocation2], 4
      %s15 = int_to_ptr.vmem [resolvable:$true] %s14
      %17 = dma.hbm_to_vmem [thread:$0]  %s0, 128, %s15, [#allocation3]
    $region5: #{tpu_custom_call.1} parent=1 // pred_fallthru
      _
    // Predicated region
    $region6: #{tpu_custom_call.1} parent=1 // pred_check
      _
    $region7: #{tpu_custom_call.1} parent=1 // pred_check_branch
      %19 = sbr.rel (0) target = $region9
    $region8: #{tpu_custom_call.1} parent=1 // pred_region
      %20 = dma.done [#allocation3], 128
    $region9: #{tpu_custom_call.1} parent=1 // pred_fallthru
      _
    %v21 = vld [vmem:[#allocation2] sm:$0xff]
    %v22 = vmul.f32 %v21, %v21
    %23 = vadd.xlane.f32.xlu0 %v22
    %v24 = vpop.xlane.xlu0 %23
    %v25 = vadd.f32 %v24, 1e-12
    %v26 = vrsqrt.pop %v25
    %v27 = vmul.f32 %v21, %v26
    %28 = vst [vmem:[#allocation5] sm:$0xff] %v27
    // Predicated region
    $region10: #{tpu_custom_call.1} parent=1 // pred_check
      _
    $region11: #{tpu_custom_call.1} parent=1 // pred_check_branch
      %30 = sbr.rel (0) target = $region13
    $region12: #{tpu_custom_call.1} parent=1 // pred_region
      %s32 = ssub.s32 128, 128
      %33 = vsyncadd [#allocation4], %s32
      %s35 = sshll.u32 [#allocation5], 4
      %s36 = int_to_ptr.vmem [resolvable:$true] %s35
      %38 = dma.vmem_to_hbm [thread:$0]  %s36, 128, %s1, [#allocation4]
    $region13: #{tpu_custom_call.1} parent=1 // pred_fallthru
      _
    // Predicated region
    $region14: #{tpu_custom_call.1} parent=1 // pred_check
      _
    $region15: #{tpu_custom_call.1} parent=1 // pred_check_branch
      %40 = sbr.rel (0) target = $region17
    $region16: #{tpu_custom_call.1} parent=1 // pred_region
      %41 = dma.done [#allocation4], 128
    $region17: #{tpu_custom_call.1} parent=1 // pred_fallthru
      _
    %42 = vsyncpa [#allocation3], 1
    %43 = vsyncpa [#allocation4], 1

</llo_original>
